<compile_context>
chip_gen: v6e
topology: v6e:2x2x1
jax: 0.10.0
libtpu: 0.0.40
codegen_flags: <defaults>
</compile_context>

<pallas_src>
import math

import jax
import jax.numpy as jnp
from jax import lax
from jax.experimental import pallas as pl
from jax.experimental.pallas import tpu as pltpu


def _fixed_embedding_weights(c_in: int, d_model: int) -> jnp.ndarray:
    """Deterministic sinusoidal table, matching the PyTorch __init__ exactly."""
    if d_model % 2 != 0:
        raise ValueError("d_model must be even (same constraint as the PyTorch module).")
    position = jnp.arange(c_in, dtype=jnp.float32)[:, None]                 # [c_in, 1]
    div_term = jnp.exp(
        jnp.arange(0, d_model, 2, dtype=jnp.float32) * -(math.log(10000.0) / d_model)
    )                                                                        # [d_model//2]
    w = jnp.zeros((c_in, d_model), dtype=jnp.float32)
    w = w.at[:, 0::2].set(jnp.sin(position * div_term))
    w = w.at[:, 1::2].set(jnp.cos(position * div_term))
    return w


def _embed_kernel(idx_ref, w_ref, o_ref):
    # idx_ref: (TM, 1) int32  -- one tile of flattened token indices
    # w_ref  : (c_in, Dp) f32 -- full (padded) table, resident across the grid
    # o_ref  : (TM, Dp)       -- one lane-dense output tile
    idx = idx_ref[...]                                        # (TM, 1)
    tm = idx.shape[0]
    c_in = w_ref.shape[0]
    iota = lax.broadcasted_iota(jnp.int32, (tm, c_in), 1)     # (TM, c_in)
    onehot = (iota == idx).astype(jnp.float32)                # (TM, c_in)
    acc = jnp.dot(onehot, w_ref[...],
                  preferred_element_type=jnp.float32)         # (TM, Dp) f32 on MXU
    o_ref[...] = acc.astype(o_ref.dtype)


def _round_up(x: int, m: int) -> int:
    return ((x + m - 1) // m) * m


def fixed_embedding(x: jnp.ndarray, w: jnp.ndarray, *,
                    out_dtype=jnp.float32, tm=None, force_pallas=False) -> jnp.ndarray:
    """x: [B, S] integer indices -> [B, S, d_model] embeddings (dtype out_dtype)."""
    B, S = x.shape
    c_in, d_model = w.shape
    N = B * S
    out_itemsize = jnp.dtype(out_dtype).itemsize

    # Tiny problems: the XLA gather is strictly faster than kernel launch +
    # per-grid-step overhead. (Demo overrides with force_pallas=True.)
    if not force_pallas and N * d_model * out_itemsize < (256 << 10):
        return w[x].astype(out_dtype)

    # Lane-dense output: pad the embedding dim up to a multiple of 128.
    Dp = _round_up(d_model, 128)
    w_p = jnp.pad(w, ((0, 0), (0, Dp - d_model))) if Dp != d_model else w

    # Tile rows: keep the double-buffered output tiles ~<= 8 MiB so we fit
    # comfortably under scoped VMEM on v5e (16 MiB default), v6e and v7x.
    if tm is None:
        budget_rows = max(8, (((8 << 20) // (2 * Dp * out_itemsize)) // 8) * 8)
        tm = min(budget_rows, _round_up(N, 8))
    tm = max(8, _round_up(int(tm), 8))

    Np = _round_up(N, tm)
    idx = x.reshape(N).astype(jnp.int32)
    if Np != N:
        idx = jnp.pad(idx, (0, Np - N))   # padded rows look up index 0; sliced off below
    idx = idx.reshape(Np, 1)

    grid = (Np // tm,)

    cost = pl.CostEstimate(
        flops=2 * Np * c_in * Dp,
        transcendentals=0,
        bytes_accessed=Np * Dp * out_itemsize + Np * 4 + c_in * Dp * 4,
    )

    out = pl.pallas_call(
        _embed_kernel,
        out_shape=jax.ShapeDtypeStruct((Np, Dp), out_dtype),
        grid_spec=pltpu.PrefetchScalarGridSpec(
            num_scalar_prefetch=0,
            grid=grid,
            in_specs=[
                pl.BlockSpec((tm, 1), lambda i: (i, 0)),      # index tile per grid step
                pl.BlockSpec((c_in, Dp), lambda i: (0, 0)),   # table: constant block, stays resident
            ],
            out_specs=pl.BlockSpec((tm, Dp), lambda i: (i, 0)),
        ),
        compiler_params=pltpu.CompilerParams(
            dimension_semantics=("parallel",),                # v7x: shard tokens over both TCs
            vmem_limit_bytes=32 << 20,
        ),
        cost_estimate=cost,
    )(idx, w_p)

    out = out[:N, :d_model]
    return out.reshape(B, S, d_model).astype(out_dtype)


if __name__ == "__main__":
    # Small shapes consistent with the module's forward: x is [batch, seq] of
    # category indices in [0, c_in).
    c_in, d_model = 16, 32
    batch, seq = 2, 8

    key = jax.random.PRNGKey(0)
    k1, k2 = jax.random.split(key)

    w = _fixed_embedding_weights(c_in, d_model)   # fixed, non-trainable weights

    # --- demo shape (forces the Pallas path despite being tiny) ---
    x = jax.random.randint(k1, (batch, seq), 0, c_in, dtype=jnp.int32)
    out = fixed_embedding(x, w, force_pallas=True)
    out = jax.block_until_ready(out)
    ref = w[x]
    assert out.shape == (batch, seq, d_model)
    assert out.dtype == jnp.float32
    assert jnp.allclose(out, ref, atol=1e-6), "mismatch vs reference lookup (small)"

    # --- slightly larger ragged shape: exercises grid > 1 and tail padding ---
    batch2, seq2 = 4, 500   # N = 2000, tm=512 -> grid of 4, padded tail
    x2 = jax.random.randint(k2, (batch2, seq2), 0, c_in, dtype=jnp.int32)
    out2 = fixed_embedding(x2, w, tm=512, force_pallas=True)
    out2 = jax.block_until_ready(out2)
    ref2 = w[x2]
    assert out2.shape == (batch2, seq2, d_model)
    assert jnp.allclose(out2, ref2, atol=1e-6), "mismatch vs reference lookup (tiled)"

    print("KERNEL_OK")
</pallas_src>

<mosaic_0001>
module attributes {stable_mosaic.version = 11 : i64} {
  func.func @_embed_kernel(%arg0: i32, %arg1: memref<16x1xi32, #tpu.memory_space<vmem>>, %arg2: memref<16x128xf32, #tpu.memory_space<vmem>>, %arg3: memref<16x128xf32, #tpu.memory_space<vmem>>) attributes {dimension_semantics = [#tpu.dimension_semantics<parallel>], iteration_bounds = array<i64: 1>, scalar_prefetch = 0 : i64, scratch_operands = 0 : i64, tpu.core_type = #tpu.core_type<tc>, window_params = [{transform_indices = @transform_0, window_bounds = array<i64: 16, 1>}, {pipeline_mode = #tpu.pipeline_mode<synchronous>, transform_indices = @transform_1, window_bounds = array<i64: 16, 128>}, {transform_indices = @transform_2, window_bounds = array<i64: 16, 128>}]} {
    %c0 = arith.constant 0 : index
    %c0_0 = arith.constant 0 : index
    %0 = vector.load %arg1[%c0, %c0_0] : memref<16x1xi32, #tpu.memory_space<vmem>>, vector<16x1xi32>
    %1 = tpu.iota {dimensions = array<i32: 1>} : vector<16x16xi32>
    %2 = vector.broadcast %0 : vector<16x1xi32> to vector<16x16xi32>
    %3 = arith.cmpi eq, %1, %2 : vector<16x16xi32>
    %4 = arith.extui %3 : vector<16x16xi1> to vector<16x16xi32>
    %5 = arith.sitofp %4 : vector<16x16xi32> to vector<16x16xf32>
    %c0_1 = arith.constant 0 : index
    %c0_2 = arith.constant 0 : index
    %6 = vector.load %arg2[%c0_1, %c0_2] : memref<16x128xf32, #tpu.memory_space<vmem>>, vector<16x128xf32>
    %cst = arith.constant dense<0.000000e+00> : vector<16x128xf32>
    %7 = tpu.matmul %5, %6, %cst {dimension_numbers = #tpu.dot_dimension_numbers<[1], [0], [0], [1], [0, 0, 1, 1], [], []>} : vector<16x16xf32>, vector<16x128xf32>, vector<16x128xf32> -> vector<16x128xf32>
    %c0_3 = arith.constant 0 : index
    %c0_4 = arith.constant 0 : index
    %8 = vector.load %arg3[%c0_3, %c0_4] : memref<16x128xf32, #tpu.memory_space<vmem>>, vector<16x128xf32>
    tpu.vector_store %arg3[%c0_3, %c0_4], %7 {strides = array<i32>} : memref<16x128xf32, #tpu.memory_space<vmem>>, vector<16x128xf32>,
    return
  }
  func.func @transform_0(%arg0: i32) -> (i32, i32) {
    %c0_i32 = arith.constant 0 : i32
    %c0_i32_0 = arith.constant 0 : i32
    return %arg0, %c0_i32 : i32, i32
  }
  func.func @transform_1(%arg0: i32) -> (i32, i32) {
    %c0_i32 = arith.constant 0 : i32
    %c0_i32_0 = arith.constant 0 : i32
    %c0_i32_1 = arith.constant 0 : i32
    return %c0_i32, %c0_i32_0 : i32, i32
  }
  func.func @transform_2(%arg0: i32) -> (i32, i32) {
    %c0_i32 = arith.constant 0 : i32
    %c0_i32_0 = arith.constant 0 : i32
    return %arg0, %c0_i32 : i32, i32
  }
}

</mosaic_0001>

<llo_original>
// kernel: tpu_custom_call.1
$region0: #{tpu_custom_call.1}
  #allocation0 [shape = 'u32[]', space=smem, size = 0x4, offset = 0x4, fixed_abs, tag = 'smem constant byte address 0x4 - core index']
  #allocation1 [shape = 'u32[144,128]{1,0:T(1,128)}', space=vmem, size = 0x12000, scoped, tag = 'internal scratch']
  %s0 = inlined_call_operand.vmem [shape: s32[16,1], index: 0, kind: input, shape index: {}]
  %s1 = inlined_call_operand.vmem [shape: f32[16,128], index: 1, kind: input, shape index: {}]
  %s2 = inlined_call_operand.hbm [shape: f32[16,128], index: 2, kind: output, shape index: {}]
  %s3 = sld [smem:[#allocation0]]
  $region18: #{tpu_custom_call.1} parent=0
    _
  %s5 = ssub.s32 1, %s3
  %s6 = scalar_select 0, %s5, %s3
  $region1: #{tpu_custom_call.1} parent=0
    #allocation2 [shape = 'u8[8192]{0}', space=vmem, size = 0x2000, scoped, tag = 'output window, operand 0, single buffered']
    #allocation3 [shape = 's32[1]{0}', space=sflag, size = 0x4, scoped, tag = 'scoped memory for tpu_custom_call.1']
    %7 = vsyncpa [#allocation3], 0
    // Predicated region
    $region2: #{tpu_custom_call.1} parent=1 // pred_check
      _
    $region3: #{tpu_custom_call.1} parent=1 // pred_check_branch
      %9 = sbr.rel (0) target = $region5
    $region4: #{tpu_custom_call.1} parent=1 // pred_region
      _
    $region5: #{tpu_custom_call.1} parent=1 // pred_fallthru
      _
    // Predicated region
    $region6: #{tpu_custom_call.1} parent=1 // pred_check
      _
    $region7: #{tpu_custom_call.1} parent=1 // pred_check_branch
      %11 = sbr.rel (0) target = $region9
    $region8: #{tpu_custom_call.1} parent=1 // pred_region
      _
    $region9: #{tpu_custom_call.1} parent=1 // pred_fallthru
      _
    %v12 = vld [vmem:[%s0] sm:$0xff]
    %v13 = vld [vmem:[%s0 + $0x8] sm:$0xff]
    %v14 = vlaneseq
    %v15 = vand.u32 %v14, 127
    %16 = vset.pattern.permute.xlu0 0
    %17 = vperm.xlu0 %16, %v12
    %v18 = vpop.permute.xlu0 %17
    %19 = vset.pattern.permute.xlu0 0
    %20 = vperm.xlu0 %19, %v13
    %v21 = vpop.permute.xlu0 %20
    %vm22 = vcmp.eq.s32.totalorder %v15, %v18
    %vm23 = vcmp.eq.s32.totalorder %v15, %v21
    %v24 = vsel %vm22, 1, 0
    %v25 = vsel %vm23, 1, 0
    %v26 = vcvt.s32.f32 %v24
    %v27 = vcvt.s32.f32 %v25
    %v28 = vld [vmem:[%s1] sm:$0xff]
    %v29 = vld [vmem:[%s1 + $0x8] sm:$0xff]
    %vm30 = vcmask 130048
    %v32 = vsel %vm30, %v26, 0
    %v35 = vsel %vm30, %v27, 0
    %37 = vmatprep.subr.mxu0 0.0
    %38 = vmatpush1.msra.mxu0 0.0
    %39 = vmatprep.subr.mxu0 0.0
    %40 = vmatpush1.msra.mxu0 0.0
    %41 = vmatprep.subr.mxu0 0.0
    %42 = vmatpush1.msra.mxu0 0.0
    %43 = vmatprep.subr.mxu0 0.0
    %44 = vmatpush1.msra.mxu0 0.0
    %45 = vmatprep.subr.mxu0 0.0
    %46 = vmatpush1.msra.mxu0 0.0
    %47 = vmatprep.subr.mxu0 0.0
    %48 = vmatpush1.msra.mxu0 0.0
    %49 = vmatprep.subr.mxu0 0.0
    %50 = vmatpush1.msra.mxu0 0.0
    %51 = vmatprep.subr.mxu0 0.0
    %52 = vmatpush1.msra.mxu0 0.0
    %53 = vmatprep.subr.mxu0 0.0
    %54 = vmatpush1.msra.mxu0 0.0
    %55 = vmatprep.subr.mxu0 0.0
    %56 = vmatpush1.msra.mxu0 0.0
    %57 = vmatprep.subr.mxu0 0.0
    %58 = vmatpush1.msra.mxu0 0.0
    %59 = vmatprep.subr.mxu0 0.0
    %60 = vmatpush1.msra.mxu0 0.0
    %61 = vmatprep.subr.mxu0 0.0
    %62 = vmatpush1.msra.mxu0 0.0
    %63 = vmatprep.subr.mxu0 0.0
    %64 = vmatpush1.msra.mxu0 0.0
    %65 = vmatprep.subr.mxu0 0.0
    %66 = vmatpush1.msra.mxu0 %v29
    %67 = vmatprep.subr.mxu0 0.0
    %68 = vmatpush1.msra.mxu0 %v28
    %69 = vmatprep.subr.mxu0 0.0
    %70 = vmatpush2.msra.mxu0 0.0
    %71 = vmatprep.subr.mxu0 0.0
    %72 = vmatpush2.msra.mxu0 0.0
    %73 = vmatprep.subr.mxu0 0.0
    %74 = vmatpush2.msra.mxu0 0.0
    %75 = vmatprep.subr.mxu0 0.0
    %76 = vmatpush2.msra.mxu0 0.0
    %77 = vmatprep.subr.mxu0 0.0
    %78 = vmatpush2.msra.mxu0 0.0
    %79 = vmatprep.subr.mxu0 0.0
    %80 = vmatpush2.msra.mxu0 0.0
    %81 = vmatprep.subr.mxu0 0.0
    %82 = vmatpush2.msra.mxu0 0.0
    %83 = vmatprep.subr.mxu0 0.0
    %84 = vmatpush2.msra.mxu0 0.0
    %85 = vmatprep.subr.mxu0 0.0
    %86 = vmatpush2.msra.mxu0 0.0
    %87 = vmatprep.subr.mxu0 0.0
    %88 = vmatpush2.msra.mxu0 0.0
    %89 = vmatprep.subr.mxu0 0.0
    %90 = vmatpush2.msra.mxu0 0.0
    %91 = vmatprep.subr.mxu0 0.0
    %92 = vmatpush2.msra.mxu0 0.0
    %93 = vmatprep.subr.mxu0 0.0
    %94 = vmatpush2.msra.mxu0 0.0
    %95 = vmatprep.subr.mxu0 0.0
    %96 = vmatpush2.msra.mxu0 0.0
    %97 = vmatprep.subr.mxu0 0.0
    %98 = vmatpush2.msra.mxu0 0.0
    %99 = vmatprep.subr.mxu0 0.0
    %100 = vmatpush2.msra.mxu0 0.0
    %101 = vmatprep.mubr.f32.mxu0 0.0
    %102 = vmatmul.mubr.f32.gmra.mxu0 %v32
    %v103 = vpop.f32.mrf.mxu0
    %v104 = vadd.f32 0.0, %v103
    %v105 = vpop.f32.mrf.mxu0
    %106 = vmatprep.mubr.f32.mxu0 0.0
    %107 = vmatmul.mubr.f32.gmra.mxu0 %v35
    %v108 = vpop.f32.mrf.mxu0
    %v109 = vadd.f32 0.0, %v108
    %v110 = vpop.f32.mrf.mxu0
    %111 = vdwg.mxu0
    %112 = vst [vmem:[#allocation2] sm:$0xff] %v104
    %113 = vst [vmem:[#allocation2 + $0x8] sm:$0xff] %v109
    // Predicated region
    $region10: #{tpu_custom_call.1} parent=1 // pred_check
      _
    $region11: #{tpu_custom_call.1} parent=1 // pred_check_branch
      %115 = sbr.rel (0) target = $region13
    $region12: #{tpu_custom_call.1} parent=1 // pred_region
      %s117 = ssub.s32 256, 256
      %118 = vsyncadd [#allocation3], %s117
      %s119 = sshll.u32 [#allocation2], 4
      %s120 = int_to_ptr.vmem [resolvable:$true] %s119
      %125 = dma.vmem_to_hbm [thread:$0]  %s120, 256, %s2, [#allocation3], 128, 128, 8
    $region13: #{tpu_custom_call.1} parent=1 // pred_fallthru
      _
    // Predicated region
    $region14: #{tpu_custom_call.1} parent=1 // pred_check
      _
    $region15: #{tpu_custom_call.1} parent=1 // pred_check_branch
      %127 = sbr.rel (0) target = $region17
    $region16: #{tpu_custom_call.1} parent=1 // pred_region
      %128 = dma.done [#allocation3], 256
    $region17: #{tpu_custom_call.1} parent=1 // pred_fallthru
      _
    %129 = vsyncpa [#allocation3], 1

</llo_original>
